<compile_context>
chip_gen: v5e
topology: v5e:2x2
jax: 0.10.0
libtpu: 0.0.40
codegen_flags: <defaults>
</compile_context>

<pallas_src>
import functools
import math

import jax
import jax.numpy as jnp
import numpy as np
from jax.experimental import pallas as pl
from jax.experimental.pallas import tpu as pltpu

_VMEM_LIMIT_BYTES = 32 * 1024 * 1024
_DEFAULT_BLOCK_ELEMS = 512 * 1024          # ~2 MiB of float32 per block


# --------------------------------------------------------------------------
# complex64 <-> interleaved float32 conversion
# --------------------------------------------------------------------------
@functools.lru_cache(maxsize=1)
def _complex_bitcast_ok() -> bool:
    """True iff lax.bitcast_convert_type supports c64<->f32 with [re, im] order."""
    try:
        z = jnp.array([1.0 + 2.0j, -3.5 + 0.25j], dtype=jnp.complex64)
        f = np.asarray(jax.lax.bitcast_convert_type(z, jnp.float32))
        if f.shape != (2, 2):
            return False
        if not np.allclose(f, np.array([[1.0, 2.0], [-3.5, 0.25]], np.float32)):
            return False
        b = np.asarray(jax.lax.bitcast_convert_type(jnp.asarray(f), jnp.complex64))
        return b.shape == (2,) and np.allclose(b, np.asarray(z))
    except Exception:
        return False


def _to_interleaved_f32(x, use_bitcast):
    """(N,C,H,W) complex64 -> (N,C,2*H*W) float32 with [re,im] interleaved lanes."""
    N, C, H, W = x.shape
    if use_bitcast:
        f = jax.lax.bitcast_convert_type(x, jnp.float32)          # (N,C,H,W,2)
    else:
        # Falls back to one fused XLA interleave pass per direction.
        f = jnp.stack([jnp.real(x), jnp.imag(x)], axis=-1)
    return f.reshape(N, C, 2 * H * W)


def _from_interleaved_f32(yf, shape, use_bitcast):
    N, C, H, W = shape
    y = yf.reshape(N, C, H, W, 2)
    if use_bitcast:
        return jax.lax.bitcast_convert_type(y, jnp.complex64)
    return jax.lax.complex(y[..., 0], y[..., 1])


# --------------------------------------------------------------------------
# Kernels
# --------------------------------------------------------------------------
def _stats_kernel(x_ref, sum_ref, sq_ref, *, hw2, hw_tile, ragged, unroll):
    """Accumulate per-channel sum / sum-of-squares of the interleaved slab.

    x_ref   : (c_blk, hw_tile) float32 tile, lanes = [re, im, re, im, ...].
    sum_ref / sq_ref : (c_blk, 128) resident accumulators (output blocks);
        real sums land on even lanes, imag on odd lanes (tile/chunk offsets
        are multiples of 128, which is even, so lane parity == global parity).
    """
    n = pl.program_id(1)
    t = pl.program_id(2)

    @pl.when(jnp.logical_and(n == 0, t == 0))
    def _():
        sum_ref[...] = jnp.zeros_like(sum_ref)
        sq_ref[...] = jnp.zeros_like(sq_ref)

    c_blk = x_ref.shape[0]
    n_chunks = hw_tile // 128
    if ragged:
        lane = jax.lax.broadcasted_iota(jnp.int32, (c_blk, 128), 1)
        base = t * hw_tile

    def body(j, carry):
        s, ss = carry
        off = pl.multiple_of(j * 128, 128)
        xc = x_ref[:, pl.ds(off, 128)]
        if ragged:
            # Mask before squaring so undefined tail lanes never contribute.
            xc = jnp.where(base + off + lane < hw2, xc, 0.0)
        return s + xc, ss + xc * xc

    zero = jnp.zeros((c_blk, 128), jnp.float32)
    s, ss = jax.lax.fori_loop(0, n_chunks, body, (zero, zero), unroll=unroll)
    sum_ref[...] += s
    sq_ref[...] += ss


def _normalize_kernel(x_ref, p_ref, o_ref, *, hw_tile, unroll):
    """out = x * scale + shift with per-channel, per-parity scale/shift.

    p_ref columns: [scale_r, scale_i, shift_r, shift_i] (shape (c_blk, 4)).
    """
    c_blk = x_ref.shape[0]
    lane = jax.lax.broadcasted_iota(jnp.int32, (c_blk, 128), 1)
    is_real = (lane & 1) == 0
    scale = jnp.where(is_real, p_ref[:, 0:1], p_ref[:, 1:2])   # (c_blk, 128)
    shift = jnp.where(is_real, p_ref[:, 2:3], p_ref[:, 3:4])
    n_chunks = hw_tile // 128

    def body(j, carry):
        off = pl.multiple_of(j * 128, 128)
        o_ref[:, pl.ds(off, 128)] = x_ref[:, pl.ds(off, 128)] * scale + shift
        return carry

    jax.lax.fori_loop(0, n_chunks, body, 0, unroll=unroll)


# --------------------------------------------------------------------------
# Tiling helpers
# --------------------------------------------------------------------------
def _round_up(x, m):
    return (x + m - 1) // m * m


def _pick_blocks(C, hw2, target_elems):
    """Channel block (sublanes), HW tile (lanes) and chunk-loop unroll factor."""
    hw_full = _round_up(max(hw2, 128), 128)
    if C % 8 == 0:
        divisors = [d for d in range(8, C + 1, 8) if C % d == 0]
        cap = max(8, (target_elems // hw_full) // 8 * 8)
        fitting = [d for d in divisors if d <= cap]
        c_blk = max(fitting) if fitting else 8
        # Keep >= 2 channel blocks when C allows so the stats pass (whose only
        # "parallel" axis is the channel axis) can use both v7x TensorCores.
        if C >= 16 and C // c_blk < 2:
            c_blk = max(d for d in divisors if C // d >= 2)
    else:
        # Non-multiple-of-8 channel counts: a full-extent block is always legal.
        c_blk = C
    hw_tile = min(hw_full, max(128, (target_elems // c_blk) // 128 * 128))
    unroll = math.gcd(hw_tile // 128, 8)
    return c_blk, hw_tile, unroll


# --------------------------------------------------------------------------
# Forward
# --------------------------------------------------------------------------
@functools.partial(jax.jit, static_argnums=(5, 6, 7))
def _forward(x, gamma_r, beta_r, gamma_i, beta_i, eps, block_elems, use_bitcast):
    N, C, H, W = x.shape
    HW2 = 2 * H * W

    xf = _to_interleaved_f32(x, use_bitcast)              # (N, C, HW2) float32

    c_blk, hw_tile, unroll = _pick_blocks(C, HW2, block_elems)
    grid = (pl.cdiv(C, c_blk), N, pl.cdiv(HW2, hw_tile))
    ragged = (HW2 % hw_tile) != 0

    x_spec = pl.BlockSpec((None, c_blk, hw_tile), lambda c, n, t: (n, c, t))
    stat_spec = pl.BlockSpec((c_blk, 128), lambda c, n, t: (c, 0))
    param_spec = pl.BlockSpec((c_blk, 4), lambda c, n, t: (c, 0))

    elems = N * C * HW2
    cost_stats = pl.CostEstimate(flops=3 * elems, transcendentals=0,
                                 bytes_accessed=4 * elems + 2 * C * 128 * 4)
    cost_norm = pl.CostEstimate(flops=2 * elems, transcendentals=0,
                                bytes_accessed=8 * elems + C * 4 * 4)

    # ---- pass 1: per-channel sum / sum-of-squares (parity separated) -------
    sum_out, sq_out = pl.pallas_call(
        functools.partial(_stats_kernel, hw2=HW2, hw_tile=hw_tile,
                          ragged=ragged, unroll=unroll),
        out_shape=(jax.ShapeDtypeStruct((C, 128), jnp.float32),
                   jax.ShapeDtypeStruct((C, 128), jnp.float32)),
        grid_spec=pltpu.PrefetchScalarGridSpec(
            num_scalar_prefetch=0,
            grid=grid,
            in_specs=[x_spec],
            out_specs=[stat_spec, stat_spec]),
        compiler_params=pltpu.CompilerParams(
            dimension_semantics=("parallel", "arbitrary", "arbitrary"),
            vmem_limit_bytes=_VMEM_LIMIT_BYTES),
        cost_estimate=cost_stats,
    )(xf)

    # ---- tiny per-channel fold on (C,)-sized data (plain JAX) --------------
    # TODO(synk): E[x^2] - E[x]^2 in f32 can lose accuracy for channels with
    # very large means; a shifted / compensated accumulation would fix that.
    count = float(N * H * W)
    sum_r = jnp.sum(sum_out[:, 0::2], axis=1)
    sum_i = jnp.sum(sum_out[:, 1::2], axis=1)
    sq_r = jnp.sum(sq_out[:, 0::2], axis=1)
    sq_i = jnp.sum(sq_out[:, 1::2], axis=1)
    mean_r = sum_r / count
    mean_i = sum_i / count
    var_r = jnp.maximum(sq_r / count - mean_r * mean_r, 0.0)
    var_i = jnp.maximum(sq_i / count - mean_i * mean_i, 0.0)
    scale_r = gamma_r.astype(jnp.float32).reshape(C) * jax.lax.rsqrt(var_r + eps)
    scale_i = gamma_i.astype(jnp.float32).reshape(C) * jax.lax.rsqrt(var_i + eps)
    shift_r = beta_r.astype(jnp.float32).reshape(C) - mean_r * scale_r
    shift_i = beta_i.astype(jnp.float32).reshape(C) - mean_i * scale_i
    params = jnp.stack([scale_r, scale_i, shift_r, shift_i], axis=1)   # (C, 4)

    # ---- pass 2: streaming out = x * scale + shift -------------------------
    out_f = pl.pallas_call(
        functools.partial(_normalize_kernel, hw_tile=hw_tile, unroll=unroll),
        out_shape=jax.ShapeDtypeStruct((N, C, HW2), jnp.float32),
        grid_spec=pltpu.PrefetchScalarGridSpec(
            num_scalar_prefetch=0,
            grid=grid,
            in_specs=[x_spec, param_spec],
            out_specs=x_spec),
        compiler_params=pltpu.CompilerParams(
            dimension_semantics=("parallel", "parallel", "parallel"),
            vmem_limit_bytes=_VMEM_LIMIT_BYTES),
        cost_estimate=cost_norm,
    )(xf, params)

    return _from_interleaved_f32(out_f, (N, C, H, W), use_bitcast)


def naive_complex_batchnorm2d(x_complex, gamma_r, beta_r, gamma_i, beta_i,
                              eps=1e-5, block_elems=_DEFAULT_BLOCK_ELEMS):
    """Forward of NaiveComplexBatchNorm2d (training-mode batch statistics).

    x_complex: (N, C, H, W) complex64 -> (N, C, H, W) complex64.
    """
    # TODO(synk): running-stat (momentum) buffer updates of the torch module
    # are not implemented; they do not affect the training-mode forward output.
    return _forward(x_complex, gamma_r, beta_r, gamma_i, beta_i,
                    float(eps), int(block_elems), _complex_bitcast_ok())


# --------------------------------------------------------------------------
# Reference + test
# --------------------------------------------------------------------------
def _reference(x, gamma_r, beta_r, gamma_i, beta_i, eps=1e-5):
    """Plain-JAX reference matching torch BatchNorm2d (training-mode stats)."""
    def bn(v, g, b):
        mean = jnp.mean(v, axis=(0, 2, 3), keepdims=True)
        var = jnp.mean((v - mean) ** 2, axis=(0, 2, 3), keepdims=True)
        return ((v - mean) * jax.lax.rsqrt(var + eps) * g.reshape(1, -1, 1, 1)
                + b.reshape(1, -1, 1, 1))

    yr = bn(jnp.real(x).astype(jnp.float32), gamma_r, beta_r)
    yi = bn(jnp.imag(x).astype(jnp.float32), gamma_i, beta_i)
    return jax.lax.complex(yr, yi)


if __name__ == "__main__":
    key = jax.random.PRNGKey(0)

    # (shape, block_elems): the tiny block_elems case forces multiple HW tiles,
    # the ragged-tail mask and the chunk loop even at a small problem size.
    cases = [((2, 4, 16, 16), _DEFAULT_BLOCK_ELEMS),
             ((2, 12, 17, 9), _DEFAULT_BLOCK_ELEMS),
             ((2, 16, 33, 33), 2048)]

    for shape, blk in cases:
        key, k1, k2, k3, k4, k5, k6 = jax.random.split(key, 7)
        N, C, H, W = shape
        x_real = jax.random.normal(k1, shape, dtype=jnp.float32)
        x_imag = jax.random.normal(k2, shape, dtype=jnp.float32)
        x = (x_real + 1j * x_imag).astype(jnp.complex64)

        gamma_r = 1.0 + 0.1 * jax.random.normal(k3, (C,), dtype=jnp.float32)
        beta_r = 0.1 * jax.random.normal(k4, (C,), dtype=jnp.float32)
        gamma_i = 1.0 + 0.1 * jax.random.normal(k5, (C,), dtype=jnp.float32)
        beta_i = 0.1 * jax.random.normal(k6, (C,), dtype=jnp.float32)

        out = naive_complex_batchnorm2d(x, gamma_r, beta_r, gamma_i, beta_i,
                                        block_elems=blk)
        out = jax.block_until_ready(out)
        ref = _reference(x, gamma_r, beta_r, gamma_i, beta_i)

        assert out.shape == shape and out.dtype == jnp.complex64
        err = float(jnp.max(jnp.abs(out - ref)))
        assert err < 2e-4, (shape, err)

    print("KERNEL_OK")
</pallas_src>

<mosaic_0001>
module attributes {stable_mosaic.version = 11 : i64} {
  func.func @_stats_kernel(%arg0: i32, %arg1: i32, %arg2: i32, %arg3: memref<1x4x512xf32, #tpu.memory_space<vmem>>, %arg4: memref<4x128xf32, #tpu.memory_space<vmem>>, %arg5: memref<4x128xf32, #tpu.memory_space<vmem>>) attributes {dimension_semantics = [#tpu.dimension_semantics<parallel>, #tpu.dimension_semantics<arbitrary>, #tpu.dimension_semantics<arbitrary>], iteration_bounds = array<i64: 1, 2, 1>, scalar_prefetch = 0 : i64, scratch_operands = 0 : i64, tpu.core_type = #tpu.core_type<tc>, window_params = [{transform_indices = @transform_0, window_bounds = array<i64: 1, 4, 512>}, {transform_indices = @transform_1, window_bounds = array<i64: 4, 128>}, {transform_indices = @transform_2, window_bounds = array<i64: 4, 128>}]} {
    %c0_i32 = arith.constant 0 : i32
    %0 = arith.cmpi eq, %arg1, %c0_i32 : i32
    %c0_i32_0 = arith.constant 0 : i32
    %1 = arith.cmpi eq, %arg2, %c0_i32_0 : i32
    %2 = arith.andi %0, %1 : i1
    %3 = arith.extui %2 : i1 to i32
    %c0_i32_1 = arith.constant 0 : i32
    %4 = arith.cmpi ne, %3, %c0_i32_1 : i32
    scf.if %4 {
      %cst_21 = arith.constant 0.000000e+00 : f32
      %44 = vector.broadcast %cst_21 : f32 to vector<4x128xf32>
      %c0_22 = arith.constant 0 : index
      %c0_23 = arith.constant 0 : index
      %45 = vector.load %arg4[%c0_22, %c0_23] : memref<4x128xf32, #tpu.memory_space<vmem>>, vector<4x128xf32>
      tpu.vector_store %arg4[%c0_22, %c0_23], %44 {strides = array<i32>} : memref<4x128xf32, #tpu.memory_space<vmem>>, vector<4x128xf32>,
      %cst_24 = arith.constant 0.000000e+00 : f32
      %46 = vector.broadcast %cst_24 : f32 to vector<4x128xf32>
      %c0_25 = arith.constant 0 : index
      %c0_26 = arith.constant 0 : index
      %47 = vector.load %arg5[%c0_25, %c0_26] : memref<4x128xf32, #tpu.memory_space<vmem>>, vector<4x128xf32>
      tpu.vector_store %arg5[%c0_25, %c0_26], %46 {strides = array<i32>} : memref<4x128xf32, #tpu.memory_space<vmem>>, vector<4x128xf32>,
    } else {
    }
    %cst = arith.constant 0.000000e+00 : f32
    %5 = vector.broadcast %cst : f32 to vector<4x128xf32>
    %c0_i32_2 = arith.constant 0 : i32
    %c128_i32 = arith.constant 128 : i32
    %6 = arith.muli %c0_i32_2, %c128_i32 : i32
    %7 = tpu.assume_multiple %6, 128 : i32
    %c0 = arith.constant 0 : index
    %c0_3 = arith.constant 0 : index
    %8 = arith.index_cast %7 : i32 to index
    %9 = vector.load %arg3[%c0, %c0_3, %8] : memref<1x4x512xf32, #tpu.memory_space<vmem>>, vector<1x4x128xf32>
    %10 = vector.shape_cast %9 : vector<1x4x128xf32> to vector<4x128xf32>
    %11 = arith.addf %5, %10 : vector<4x128xf32>
    %12 = arith.mulf %10, %10 : vector<4x128xf32>
    %13 = arith.addf %5, %12 : vector<4x128xf32>
    %c1_i32 = arith.constant 1 : i32
    %c128_i32_4 = arith.constant 128 : i32
    %14 = arith.muli %c1_i32, %c128_i32_4 : i32
    %15 = tpu.assume_multiple %14, 128 : i32
    %c0_5 = arith.constant 0 : index
    %c0_6 = arith.constant 0 : index
    %16 = arith.index_cast %15 : i32 to index
    %17 = vector.load %arg3[%c0_5, %c0_6, %16] : memref<1x4x512xf32, #tpu.memory_space<vmem>>, vector<1x4x128xf32>
    %18 = vector.shape_cast %17 : vector<1x4x128xf32> to vector<4x128xf32>
    %19 = arith.addf %11, %18 : vector<4x128xf32>
    %20 = arith.mulf %18, %18 : vector<4x128xf32>
    %21 = arith.addf %13, %20 : vector<4x128xf32>
    %c2_i32 = arith.constant 2 : i32
    %c128_i32_7 = arith.constant 128 : i32
    %22 = arith.muli %c2_i32, %c128_i32_7 : i32
    %23 = tpu.assume_multiple %22, 128 : i32
    %c0_8 = arith.constant 0 : index
    %c0_9 = arith.constant 0 : index
    %24 = arith.index_cast %23 : i32 to index
    %25 = vector.load %arg3[%c0_8, %c0_9, %24] : memref<1x4x512xf32, #tpu.memory_space<vmem>>, vector<1x4x128xf32>
    %26 = vector.shape_cast %25 : vector<1x4x128xf32> to vector<4x128xf32>
    %27 = arith.addf %19, %26 : vector<4x128xf32>
    %28 = arith.mulf %26, %26 : vector<4x128xf32>
    %29 = arith.addf %21, %28 : vector<4x128xf32>
    %c3_i32 = arith.constant 3 : i32
    %c128_i32_10 = arith.constant 128 : i32
    %30 = arith.muli %c3_i32, %c128_i32_10 : i32
    %31 = tpu.assume_multiple %30, 128 : i32
    %c0_11 = arith.constant 0 : index
    %c0_12 = arith.constant 0 : index
    %32 = arith.index_cast %31 : i32 to index
    %33 = vector.load %arg3[%c0_11, %c0_12, %32] : memref<1x4x512xf32, #tpu.memory_space<vmem>>, vector<1x4x128xf32>
    %34 = vector.shape_cast %33 : vector<1x4x128xf32> to vector<4x128xf32>
    %35 = arith.addf %27, %34 : vector<4x128xf32>
    %36 = arith.mulf %34, %34 : vector<4x128xf32>
    %37 = arith.addf %29, %36 : vector<4x128xf32>
    %c4_i32 = arith.constant 4 : i32
    %c0_13 = arith.constant 0 : index
    %c0_14 = arith.constant 0 : index
    %38 = vector.load %arg4[%c0_13, %c0_14] : memref<4x128xf32, #tpu.memory_space<vmem>>, vector<4x128xf32>
    %39 = arith.addf %38, %35 : vector<4x128xf32>
    %c0_15 = arith.constant 0 : index
    %c0_16 = arith.constant 0 : index
    %40 = vector.load %arg4[%c0_15, %c0_16] : memref<4x128xf32, #tpu.memory_space<vmem>>, vector<4x128xf32>
    tpu.vector_store %arg4[%c0_15, %c0_16], %39 {strides = array<i32>} : memref<4x128xf32, #tpu.memory_space<vmem>>, vector<4x128xf32>,
    %c0_17 = arith.constant 0 : index
    %c0_18 = arith.constant 0 : index
    %41 = vector.load %arg5[%c0_17, %c0_18] : memref<4x128xf32, #tpu.memory_space<vmem>>, vector<4x128xf32>
    %42 = arith.addf %41, %37 : vector<4x128xf32>
    %c0_19 = arith.constant 0 : index
    %c0_20 = arith.constant 0 : index
    %43 = vector.load %arg5[%c0_19, %c0_20] : memref<4x128xf32, #tpu.memory_space<vmem>>, vector<4x128xf32>
    tpu.vector_store %arg5[%c0_19, %c0_20], %42 {strides = array<i32>} : memref<4x128xf32, #tpu.memory_space<vmem>>, vector<4x128xf32>,
    return
  }
  func.func @transform_0(%arg0: i32, %arg1: i32, %arg2: i32) -> (i32, i32, i32) {
    %c0_i32 = arith.constant 0 : i32
    return %arg1, %arg0, %arg2 : i32, i32, i32
  }
  func.func @transform_1(%arg0: i32, %arg1: i32, %arg2: i32) -> (i32, i32) {
    %c0_i32 = arith.constant 0 : i32
    %c0_i32_0 = arith.constant 0 : i32
    return %arg0, %c0_i32 : i32, i32
  }
  func.func @transform_2(%arg0: i32, %arg1: i32, %arg2: i32) -> (i32, i32) {
    %c0_i32 = arith.constant 0 : i32
    %c0_i32_0 = arith.constant 0 : i32
    return %arg0, %c0_i32 : i32, i32
  }
}

module attributes {stable_mosaic.version = 11 : i64} {
  func.func @_normalize_kernel(%arg0: i32, %arg1: i32, %arg2: i32, %arg3: memref<1x4x512xf32, #tpu.memory_space<vmem>>, %arg4: memref<4x4xf32, #tpu.memory_space<vmem>>, %arg5: memref<1x4x512xf32, #tpu.memory_space<vmem>>) attributes {dimension_semantics = [#tpu.dimension_semantics<parallel>, #tpu.dimension_semantics<parallel>, #tpu.dimension_semantics<parallel>], iteration_bounds = array<i64: 1, 2, 1>, scalar_prefetch = 0 : i64, scratch_operands = 0 : i64, tpu.core_type = #tpu.core_type<tc>, window_params = [{transform_indices = @transform_0, window_bounds = array<i64: 1, 4, 512>}, {transform_indices = @transform_1, window_bounds = array<i64: 4, 4>}, {transform_indices = @transform_2, window_bounds = array<i64: 1, 4, 512>}]} {
    %0 = tpu.iota {dimensions = array<i32: 1>} : vector<4x128xi32>
    %c1_i32 = arith.constant 1 : i32
    %1 = vector.broadcast %c1_i32 : i32 to vector<4x128xi32>
    %2 = arith.andi %0, %1 : vector<4x128xi32>
    %c0_i32 = arith.constant 0 : i32
    %3 = vector.broadcast %c0_i32 : i32 to vector<4x128xi32>
    %4 = arith.cmpi eq, %2, %3 : vector<4x128xi32>
    %c0 = arith.constant 0 : index
    %c0_0 = arith.constant 0 : index
    %5 = vector.load %arg4[%c0, %c0_0] : memref<4x4xf32, #tpu.memory_space<vmem>>, vector<4x1xf32>
    %c0_1 = arith.constant 0 : index
    %c1 = arith.constant 1 : index
    %6 = vector.load %arg4[%c0_1, %c1] : memref<4x4xf32, #tpu.memory_space<vmem>>, vector<4x1xf32>
    %7 = vector.shape_cast %5 : vector<4x1xf32> to vector<4x1xf32>
    %8 = vector.broadcast %7 : vector<4x1xf32> to vector<4x128xf32>
    %9 = vector.shape_cast %6 : vector<4x1xf32> to vector<4x1xf32>
    %10 = vector.broadcast %9 : vector<4x1xf32> to vector<4x128xf32>
    %11 = arith.select %4, %8, %10 : vector<4x128xi1>, vector<4x128xf32>
    %c0_2 = arith.constant 0 : index
    %c2 = arith.constant 2 : index
    %12 = vector.load %arg4[%c0_2, %c2] : memref<4x4xf32, #tpu.memory_space<vmem>>, vector<4x1xf32>
    %c0_3 = arith.constant 0 : index
    %c3 = arith.constant 3 : index
    %13 = vector.load %arg4[%c0_3, %c3] : memref<4x4xf32, #tpu.memory_space<vmem>>, vector<4x1xf32>
    %14 = vector.shape_cast %12 : vector<4x1xf32> to vector<4x1xf32>
    %15 = vector.broadcast %14 : vector<4x1xf32> to vector<4x128xf32>
    %16 = vector.shape_cast %13 : vector<4x1xf32> to vector<4x1xf32>
    %17 = vector.broadcast %16 : vector<4x1xf32> to vector<4x128xf32>
    %18 = arith.select %4, %15, %17 : vector<4x128xi1>, vector<4x128xf32>
    %c0_i32_4 = arith.constant 0 : i32
    %c128_i32 = arith.constant 128 : i32
    %19 = arith.muli %c0_i32_4, %c128_i32 : i32
    %20 = tpu.assume_multiple %19, 128 : i32
    %c0_5 = arith.constant 0 : index
    %c0_6 = arith.constant 0 : index
    %21 = arith.index_cast %20 : i32 to index
    %22 = vector.load %arg3[%c0_5, %c0_6, %21] : memref<1x4x512xf32, #tpu.memory_space<vmem>>, vector<1x4x128xf32>
    %23 = vector.shape_cast %22 : vector<1x4x128xf32> to vector<4x128xf32>
    %24 = arith.mulf %23, %11 : vector<4x128xf32>
    %25 = arith.addf %24, %18 : vector<4x128xf32>
    %c0_7 = arith.constant 0 : index
    %c0_8 = arith.constant 0 : index
    %26 = arith.index_cast %20 : i32 to index
    %27 = vector.load %arg5[%c0_7, %c0_8, %26] : memref<1x4x512xf32, #tpu.memory_space<vmem>>, vector<1x4x128xf32>
    %28 = vector.shape_cast %27 : vector<1x4x128xf32> to vector<4x128xf32>
    %29 = vector.shape_cast %25 : vector<4x128xf32> to vector<1x4x128xf32>
    tpu.vector_store %arg5[%c0_7, %c0_8, %26], %29 {strides = array<i32>} : memref<1x4x512xf32, #tpu.memory_space<vmem>>, vector<1x4x128xf32>,
    %c1_i32_9 = arith.constant 1 : i32
    %c128_i32_10 = arith.constant 128 : i32
    %30 = arith.muli %c1_i32_9, %c128_i32_10 : i32
    %31 = tpu.assume_multiple %30, 128 : i32
    %c0_11 = arith.constant 0 : index
    %c0_12 = arith.constant 0 : index
    %32 = arith.index_cast %31 : i32 to index
    %33 = vector.load %arg3[%c0_11, %c0_12, %32] : memref<1x4x512xf32, #tpu.memory_space<vmem>>, vector<1x4x128xf32>
    %34 = vector.shape_cast %33 : vector<1x4x128xf32> to vector<4x128xf32>
    %35 = arith.mulf %34, %11 : vector<4x128xf32>
    %36 = arith.addf %35, %18 : vector<4x128xf32>
    %c0_13 = arith.constant 0 : index
    %c0_14 = arith.constant 0 : index
    %37 = arith.index_cast %31 : i32 to index
    %38 = vector.load %arg5[%c0_13, %c0_14, %37] : memref<1x4x512xf32, #tpu.memory_space<vmem>>, vector<1x4x128xf32>
    %39 = vector.shape_cast %38 : vector<1x4x128xf32> to vector<4x128xf32>
    %40 = vector.shape_cast %36 : vector<4x128xf32> to vector<1x4x128xf32>
    tpu.vector_store %arg5[%c0_13, %c0_14, %37], %40 {strides = array<i32>} : memref<1x4x512xf32, #tpu.memory_space<vmem>>, vector<1x4x128xf32>,
    %c2_i32 = arith.constant 2 : i32
    %c128_i32_15 = arith.constant 128 : i32
    %41 = arith.muli %c2_i32, %c128_i32_15 : i32
    %42 = tpu.assume_multiple %41, 128 : i32
    %c0_16 = arith.constant 0 : index
    %c0_17 = arith.constant 0 : index
    %43 = arith.index_cast %42 : i32 to index
    %44 = vector.load %arg3[%c0_16, %c0_17, %43] : memref<1x4x512xf32, #tpu.memory_space<vmem>>, vector<1x4x128xf32>
    %45 = vector.shape_cast %44 : vector<1x4x128xf32> to vector<4x128xf32>
    %46 = arith.mulf %45, %11 : vector<4x128xf32>
    %47 = arith.addf %46, %18 : vector<4x128xf32>
    %c0_18 = arith.constant 0 : index
    %c0_19 = arith.constant 0 : index
    %48 = arith.index_cast %42 : i32 to index
    %49 = vector.load %arg5[%c0_18, %c0_19, %48] : memref<1x4x512xf32, #tpu.memory_space<vmem>>, vector<1x4x128xf32>
    %50 = vector.shape_cast %49 : vector<1x4x128xf32> to vector<4x128xf32>
    %51 = vector.shape_cast %47 : vector<4x128xf32> to vector<1x4x128xf32>
    tpu.vector_store %arg5[%c0_18, %c0_19, %48], %51 {strides = array<i32>} : memref<1x4x512xf32, #tpu.memory_space<vmem>>, vector<1x4x128xf32>,
    %c3_i32 = arith.constant 3 : i32
    %c128_i32_20 = arith.constant 128 : i32
    %52 = arith.muli %c3_i32, %c128_i32_20 : i32
    %53 = tpu.assume_multiple %52, 128 : i32
    %c0_21 = arith.constant 0 : index
    %c0_22 = arith.constant 0 : index
    %54 = arith.index_cast %53 : i32 to index
    %55 = vector.load %arg3[%c0_21, %c0_22, %54] : memref<1x4x512xf32, #tpu.memory_space<vmem>>, vector<1x4x128xf32>
    %56 = vector.shape_cast %55 : vector<1x4x128xf32> to vector<4x128xf32>
    %57 = arith.mulf %56, %11 : vector<4x128xf32>
    %58 = arith.addf %57, %18 : vector<4x128xf32>
    %c0_23 = arith.constant 0 : index
    %c0_24 = arith.constant 0 : index
    %59 = arith.index_cast %53 : i32 to index
    %60 = vector.load %arg5[%c0_23, %c0_24, %59] : memref<1x4x512xf32, #tpu.memory_space<vmem>>, vector<1x4x128xf32>
    %61 = vector.shape_cast %60 : vector<1x4x128xf32> to vector<4x128xf32>
    %62 = vector.shape_cast %58 : vector<4x128xf32> to vector<1x4x128xf32>
    tpu.vector_store %arg5[%c0_23, %c0_24, %59], %62 {strides = array<i32>} : memref<1x4x512xf32, #tpu.memory_space<vmem>>, vector<1x4x128xf32>,
    %c4_i32 = arith.constant 4 : i32
    return
  }
  func.func @transform_0(%arg0: i32, %arg1: i32, %arg2: i32) -> (i32, i32, i32) {
    %c0_i32 = arith.constant 0 : i32
    return %arg1, %arg0, %arg2 : i32, i32, i32
  }
  func.func @transform_1(%arg0: i32, %arg1: i32, %arg2: i32) -> (i32, i32) {
    %c0_i32 = arith.constant 0 : i32
    %c0_i32_0 = arith.constant 0 : i32
    return %arg0, %c0_i32 : i32, i32
  }
  func.func @transform_2(%arg0: i32, %arg1: i32, %arg2: i32) -> (i32, i32, i32) {
    %c0_i32 = arith.constant 0 : i32
    return %arg1, %arg0, %arg2 : i32, i32, i32
  }
}

</mosaic_0001>

<llo_original>
// kernel: custom-call.1
$region0: #{custom-call.1}
  %s0 = inlined_call_operand.hbm [shape: c64[2,4,16,16], index: 0, kind: input, shape index: {}]
  %s1 = inlined_call_operand.vmem [shape: f32[2,4,16,16], index: 1, kind: output, shape index: {}]
  %s2 = scalar_lea.hbm %s0, 128
  $region1: #{custom-call.1} parent=0
    #allocation0 [shape = 's32[1]{0}', space=sflag, size = 0x4, scoped, tag = 'scoped memory for custom-call.1']
    %3 = vsyncpa [#allocation0], 0
    %s5 = sshll.u32 %s2, 4
    %s6 = int_to_ptr.hbm [resolvable:$true] %s5
    %s7 = sshll.u32 %s1, 4
    %s8 = int_to_ptr.vmem [resolvable:$true] %s7
    %10 = dma.hbm_to_vmem [thread:$0]  %s6, 2048, %s8, [#allocation0]
    %12 = dma.done [#allocation0], 2048
    %13 = vsyncpa [#allocation0], 1

// kernel: custom-call
$region0: #{custom-call}
  %s0 = inlined_call_operand.hbm [shape: c64[2,4,16,16], index: 0, kind: input, shape index: {}]
  %s1 = inlined_call_operand.vmem [shape: f32[2,4,16,16], index: 1, kind: output, shape index: {}]
  $region1: #{custom-call} parent=0
    #allocation0 [shape = 's32[1]{0}', space=sflag, size = 0x4, scoped, tag = 'scoped memory for custom-call']
    %2 = vsyncpa [#allocation0], 0
    %s4 = sshll.u32 %s0, 4
    %s5 = int_to_ptr.hbm [resolvable:$true] %s4
    %s6 = sshll.u32 %s1, 4
    %s7 = int_to_ptr.vmem [resolvable:$true] %s6
    %9 = dma.hbm_to_vmem [thread:$0]  %s5, 2048, %s7, [#allocation0]
    %11 = dma.done [#allocation0], 2048
    %12 = vsyncpa [#allocation0], 1

// kernel: _forward.2
$region0: #{_forward.2}
  #allocation0 [shape = 'u32[]', space=smem, size = 0x4, offset = 0x4, fixed_abs, tag = 'smem constant byte address 0x4 - core index']
  #allocation1 [shape = 'u32[72,128]{1,0:T(1,128)}', space=vmem, size = 0x9000, scoped, tag = 'internal scratch']
  %s0 = inlined_call_operand.vmem [shape: f32[2,4,512], index: 0, kind: input, shape index: {}]
  %s1 = inlined_call_operand.vmem [shape: f32[4,128], index: 1, kind: output, shape index: {0}]
  %s2 = inlined_call_operand.vmem [shape: f32[4,128], index: 2, kind: output, shape index: {1}]
  %3 = xla_tuple %s1, %s2
  %s4 = sld [smem:[#allocation0]]
  $region49: #{_forward.2} parent=0
    _
  %s6 = ssub.s32 1, %s4
  %s7 = scalar_select 0, %s6, %s4
  loop: start=0, step=1, limit=4
  $region2: #{_forward.2} parent=0 // loop_pre_header
    _
  $region3: #{_forward.2} parent=0 // loop_header
    %s9 = sphi 0, %s13
    %p10 = scmp.ge.s32.totalorder %s9, 4
    %s16 = sphi 0, %s35
    %s17 = sphi 0, %s31
    %s18 = sphi 0, %s27
    %s19 = sphi 0, %s16
    %s20 = sphi 0, %s17
    %s21 = sphi 0, %s18
    %s22 = sphi 0, %s19
    %s23 = sphi 0, %s20
    %s24 = sphi 0, %s21
    %s42 = sphi 0, %s44
    %s45 = sphi 0, %s42
    %s46 = sphi 0, %s45
    %s62 = sphi 0, %s46
    %s68 = sphi 0, %s70
    %s71 = sphi 0, %s68
    %s72 = sphi 0, %s71
    %s88 = sphi 0, %s72
    %s94 = sphi 0, %s96
    %s97 = sphi 0, %s94
    %s98 = sphi 0, %s97
    %s114 = sphi 0, %s98
  $region4: #{_forward.2} parent=0 // loop_header_branch
    %12 = sbr.rel (%p10) target = $region8
  $region5: #{_forward.2} parent=0 // loop_body
    %s14 = ssub.s32 %s9, 1
    %s15 = ssub.s32 %s9, 2
    %s25 = sadd.s32 1, %s18
    %p26 = scmp.ge.s32.totalorder %s25, 1
    %s27 = scalar_select %p26, 0, %s25
    %s28 = sadd.s32 1, %s17
    %s29 = scalar_select %p26, %s28, %s17
    %p30 = scmp.ge.s32.totalorder %s29, 2
    %s31 = scalar_select %p30, 0, %s29
    %s32 = sadd.s32 1, %s16
    %s33 = scalar_select %p30, %s32, %s16
    %p34 = scmp.ge.s32.totalorder %s33, 1
    %s35 = scalar_select %p34, 0, %s33
    %s36 = ssub.s32 %s17, %s31
    %s37 = ssub.s32 %s16, %s35
    %s38 = sor.u32 %s36, %s37
    %s39 = ssub.s32 %s18, %s27
    %s40 = sor.u32 %s38, %s39
    %p41 = scmp.eq.s32.totalorder %s40, 0
    %s43 = sadd.s32 %s42, 1
    %s44 = scalar_select %p41, %s42, %s43
    %p47 = pneg %p41
    %p48 = scmp.eq.s32.totalorder %s9, 1
    %p49 = por %p47, %p48
    %p50 = scmp.ne.s32.totalorder %s42, %s45
    %p51 = scmp.eq.s32.totalorder %s9, 0
    %p52 = por %p50, %p51
    %p53 = scmp.ne.s32.totalorder %s42, %s45
    %p54 = scmp.eq.s32.totalorder %s14, 1
    %p55 = por %p53, %p54
    %p56 = scmp.ne.s32.totalorder %s45, %s46
    %p57 = scmp.eq.s32.totalorder %s14, 0
    %p58 = por %p56, %p57
    %p59 = scmp.ne.s32.totalorder %s45, %s46
    %p60 = scmp.eq.s32.totalorder %s15, 1
    %p61 = por %p59, %p60
    %p63 = scmp.ne.s32.totalorder %s46, %s62
    %p64 = scmp.eq.s32.totalorder %s15, 0
    %p65 = por %p63, %p64
    %s66 = ssub.s32 %s16, %s35
    %p67 = scmp.eq.s32.totalorder %s66, 0
    %s69 = sadd.s32 %s68, 1
    %s70 = scalar_select %p67, %s68, %s69
    %p73 = pneg %p67
    %p74 = scmp.eq.s32.totalorder %s9, 1
    %p75 = por %p73, %p74
    %p76 = scmp.ne.s32.totalorder %s68, %s71
    %p77 = scmp.eq.s32.totalorder %s9, 0
    %p78 = por %p76, %p77
    %p79 = scmp.ne.s32.totalorder %s68, %s71
    %p80 = scmp.eq.s32.totalorder %s14, 1
    %p81 = por %p79, %p80
    %p82 = scmp.ne.s32.totalorder %s71, %s72
    %p83 = scmp.eq.s32.totalorder %s14, 0
    %p84 = por %p82, %p83
    %p85 = scmp.ne.s32.totalorder %s71, %s72
    %p86 = scmp.eq.s32.totalorder %s15, 1
    %p87 = por %p85, %p86
    %p89 = scmp.ne.s32.totalorder %s72, %s88
    %p90 = scmp.eq.s32.totalorder %s15, 0
    %p91 = por %p89, %p90
    %s92 = ssub.s32 %s16, %s35
    %p93 = scmp.eq.s32.totalorder %s92, 0
    %s95 = sadd.s32 %s94, 1
    %s96 = scalar_select %p93, %s94, %s95
    %p99 = pneg %p93
    %p100 = scmp.eq.s32.totalorder %s9, 1
    %p101 = por %p99, %p100
    %p102 = scmp.ne.s32.totalorder %s94, %s97
    %p103 = scmp.eq.s32.totalorder %s9, 0
    %p104 = por %p102, %p103
    %p105 = scmp.ne.s32.totalorder %s94, %s97
    %p106 = scmp.eq.s32.totalorder %s14, 1
    %p107 = por %p105, %p106
    %p108 = scmp.ne.s32.totalorder %s97, %s98
    %p109 = scmp.eq.s32.totalorder %s14, 0
    %p110 = por %p108, %p109
    %p111 = scmp.ne.s32.totalorder %s97, %s98
    %p112 = scmp.eq.s32.totalorder %s15, 1
    %p113 = por %p111, %p112
    %p115 = scmp.ne.s32.totalorder %s98, %s114
    %p116 = scmp.eq.s32.totalorder %s15, 0
    %p117 = por %p115, %p116
    %p118 = scmp.le.s32.totalorder 1, %s9
    %p119 = scmp.lt.s32.totalorder %s9, 3
    %p120 = pnand %p118, %p119
    %p121 = pneg %p120
    // Predicated region
    $region9: #{_forward.2} parent=5 // pred_check
      _
    $region10: #{_forward.2} parent=5 // pred_check_branch
      %123 = sbr.rel (%p120) target = $region12
    $region11: #{_forward.2} parent=5 // pred_region
      %s124 = ssub.s32 %s9, 1
    $region12: #{_forward.2} parent=5 // pred_fallthru
      _
    %p125 = scmp.lt.s32.totalorder %s9, 2
    // Predicated region
    $region13: #{_forward.2} parent=5 // pred_check
      %p126 = pneg %p125
    $region14: #{_forward.2} parent=5 // pred_check_branch
      %128 = sbr.rel (%p126) target = $region16
    $region15: #{_forward.2} parent=5 // pred_region
      // Predicated region
      $region17: #{_forward.2} parent=15 // pred_check
        %p129 = pneg %p52
      $region18: #{_forward.2} parent=15 // pred_check_branch
        %131 = sbr.rel (%p129) target = $region20
      $region19: #{_forward.2} parent=15 // pred_region
        %s132 = smul.u32 4, %s18
        %p133 = scmp.lt.s32.totalorder %s17, 1
        %s134 = scalar_select %p133, %s17, 1
        %p135 = scmp.lt.s32.totalorder %s16, 0
        %s136 = scalar_select %p135, %s16, 0
        %p137 = scmp.lt.s32.totalorder %s132, 3
        %s138 = scalar_select %p137, %s132, 3
        %s139 = smul.addr %s136, 4
        %s140 = sadd.s32 %s138, %s139
        %s141 = smul.addr %s134, 4
        %s142 = sadd.s32 %s140, %s141
        %s143 = smul.addr %s142, 4
        %s144 = scalar_lea.vmem %s0, %s143
        %s145 = smul.u32 4, %s18
      $region20: #{_forward.2} parent=15 // pred_fallthru
        _
    $region16: #{_forward.2} parent=5 // pred_fallthru
      _
    %p146 = scmp.le.s32.totalorder 1, %s9
    %p147 = scmp.lt.s32.totalorder %s9, 3
    %p148 = pnand %p146, %p147
    %p149 = pneg %p148
    // Predicated region
    $region21: #{_forward.2} parent=5 // pred_check
      _
    $region22: #{_forward.2} parent=5 // pred_check_branch
      %151 = sbr.rel (%p148) target = $region24
    $region23: #{_forward.2} parent=5 // pred_region
      %s152 = ssub.s32 %s9, 1
      %s153 = smul.u32 4, %s21
      %p154 = scmp.lt.s32.totalorder %s20, 1
      %s155 = scalar_select %p154, %s20, 1
      %p156 = scmp.lt.s32.totalorder %s19, 0
      %s157 = scalar_select %p156, %s19, 0
      %p158 = scmp.lt.s32.totalorder %s153, 3
      %s159 = scalar_select %p158, %s153, 3
      %s160 = smul.addr %s157, 4
      %s161 = sadd.s32 %s159, %s160
      %s162 = smul.addr %s155, 4
      %s163 = sadd.s32 %s161, %s162
      %s164 = smul.addr %s163, 4
      %s165 = scalar_lea.vmem %s0, %s164
      %p166 = pneg %p58
      %p167 = pneg %p55
      %p168 = pneg %p84
      %p169 = pneg %p81
      %p170 = scmp.lt.s32.totalorder %s19, 0
      %s171 = scalar_select %p170, %s19, 0
      %s172 = smul.addr %s171, 4
      %s173 = scalar_lea.vmem %s1, %s172
      %p174 = pneg %p110
      %p175 = pneg %p107
      %p176 = scmp.lt.s32.totalorder %s19, 0
      %s177 = scalar_select %p176, %s19, 0
      %s178 = smul.addr %s177, 4
      %s179 = scalar_lea.vmem %s2, %s178
      %s180 = smul.u32 4, %s21
      %p181 = scmp.lt.s32.totalorder %s20, 1
      %s182 = scalar_select %p181, %s20, 1
      %p183 = scmp.lt.s32.totalorder %s19, 0
      %s184 = scalar_select %p183, %s19, 0
      %p185 = scmp.lt.s32.totalorder %s180, 3
      %s186 = scalar_select %p185, %s180, 3
      %s187 = smul.addr %s184, 4
      %s188 = sadd.s32 %s186, %s187
      %s189 = smul.addr %s182, 4
      %s190 = sadd.s32 %s188, %s189
      %s191 = smul.addr %s190, 4
      %s192 = scalar_lea.vmem %s0, %s191
      %s193 = smul.u32 4, %s21
      %p194 = scmp.lt.s32.totalorder %s19, 0
      %s195 = scalar_select %p194, %s19, 0
      %s196 = smul.addr %s195, 4
      %s197 = scalar_lea.vmem %s1, %s196
      %p198 = scmp.lt.s32.totalorder %s19, 0
      %s199 = scalar_select %p198, %s19, 0
      %s200 = smul.addr %s199, 4
      %s201 = scalar_lea.vmem %s2, %s200
      %p202 = scmp.eq.s32.totalorder %s20, 0
      %p203 = scmp.eq.s32.totalorder %s21, 0
      %p204 = pnand %p202, %p203
      %p205 = pneg %p204
      // Predicated region
      $region25: #{_forward.2} parent=23 // pred_check
        _
      $region26: #{_forward.2} parent=23 // pred_check_branch
        %207 = sbr.rel (%p204) target = $region28
      $region27: #{_forward.2} parent=23 // pred_region
        %208 = vst [vmem:[%s197] sm:$0xf] 0.0
        %209 = vst [vmem:[%s201] sm:$0xf] 0.0
      $region28: #{_forward.2} parent=23 // pred_fallthru
        _
      %v210 = vld [vmem:[%s192] sm:$0xf]
      %v211 = vadd.f32 %v210, 0.0
      %v212 = vmul.f32 %v210, %v210
      %v213 = vadd.f32 %v212, 0.0
      %s214 = scalar_lea.vmem %s192, 4
      %v215 = vld [vmem:[%s214] sm:$0xf]
      %v216 = vadd.f32 %v211, %v215
      %v217 = vmul.f32 %v215, %v215
      %v218 = vadd.f32 %v213, %v217
      %s219 = scalar_lea.vmem %s192, 8
      %v220 = vld [vmem:[%s219] sm:$0xf]
      %v221 = vadd.f32 %v216, %v220
      %v222 = vmul.f32 %v220, %v220
      %v223 = vadd.f32 %v218, %v222
      %s224 = scalar_lea.vmem %s192, 12
      %v225 = vld [vmem:[%s224] sm:$0xf]
      %v226 = vadd.f32 %v221, %v225
      %v227 = vmul.f32 %v225, %v225
      %v228 = vadd.f32 %v223, %v227
      %v229 = vld [vmem:[%s197] sm:$0xf]
      %v230 = vadd.f32 %v229, %v226
      %231 = vst [vmem:[%s197] sm:$0xf] %v230
      %v232 = vld [vmem:[%s201] sm:$0xf]
      %v233 = vadd.f32 %v232, %v228
      %234 = vst [vmem:[%s201] sm:$0xf] %v233
      %p235 = scmp.lt.s32.totalorder %s19, 0
      %s236 = scalar_select %p235, %s19, 0
      %s237 = smul.addr %s236, 4
      %s238 = scalar_lea.vmem %s1, %s237
      %p239 = scmp.lt.s32.totalorder %s19, 0
      %s240 = scalar_select %p239, %s19, 0
      %s241 = smul.addr %s240, 4
      %s242 = scalar_lea.vmem %s2, %s241
      // Predicated region
      $region29: #{_forward.2} parent=23 // pred_check
        %p243 = pneg %p81
      $region30: #{_forward.2} parent=23 // pred_check_branch
        %245 = sbr.rel (%p243) target = $region32
      $region31: #{_forward.2} parent=23 // pred_region
        _
      $region32: #{_forward.2} parent=23 // pred_fallthru
        _
      // Predicated region
      $region33: #{_forward.2} parent=23 // pred_check
        %p246 = pneg %p107
      $region34: #{_forward.2} parent=23 // pred_check_branch
        %248 = sbr.rel (%p246) target = $region36
      $region35: #{_forward.2} parent=23 // pred_region
        _
      $region36: #{_forward.2} parent=23 // pred_fallthru
        _
      // Predicated region
      $region37: #{_forward.2} parent=23 // pred_check
        %p249 = pneg %p81
      $region38: #{_forward.2} parent=23 // pred_check_branch
        %251 = sbr.rel (%p249) target = $region40
      $region39: #{_forward.2} parent=23 // pred_region
        %p252 = scmp.lt.s32.totalorder %s19, 0
        %s253 = scalar_select %p252, %s19, 0
        %s254 = smul.addr %s253, 4
        %s255 = scalar_lea.vmem %s1, %s254
      $region40: #{_forward.2} parent=23 // pred_fallthru
        _
      // Predicated region
      $region41: #{_forward.2} parent=23 // pred_check
        %p256 = pneg %p107
      $region42: #{_forward.2} parent=23 // pred_check_branch
        %258 = sbr.rel (%p256) target = $region44
      $region43: #{_forward.2} parent=23 // pred_region
        %p259 = scmp.lt.s32.totalorder %s19, 0
        %s260 = scalar_select %p259, %s19, 0
        %s261 = smul.addr %s260, 4
        %s262 = scalar_lea.vmem %s2, %s261
      $region44: #{_forward.2} parent=23 // pred_fallthru
        _
    $region24: #{_forward.2} parent=5 // pred_fallthru
      _
    %p263 = scmp.le.s32.totalorder 2, %s9
    // Predicated region
    $region45: #{_forward.2} parent=5 // pred_check
      %p264 = pneg %p263
    $region46: #{_forward.2} parent=5 // pred_check_branch
      %266 = sbr.rel (%p264) target = $region48
    $region47: #{_forward.2} parent=5 // pred_region
      %s267 = ssub.s32 %s9, 2
    $region48: #{_forward.2} parent=5 // pred_fallthru
      _
  $region6: #{_forward.2} parent=0 // loop_footer
    %s13 = sadd.s32 1, %s9
  $region7: #{_forward.2} parent=0 // loop_footer_branch
    %8 = sbr.rel target = $region3
  $region8: #{_forward.2} parent=0 // loop_exit
    _

// kernel: custom-call.2
$region0: #{custom-call.2}
  %s0 = inlined_call_operand.vmem [shape: f32[2,4,16,16], index: 0, kind: input, shape index: {}]
  %s1 = inlined_call_operand.vmem [shape: f32[2,4,16,16], index: 1, kind: input, shape index: {}]
  %s2 = inlined_call_operand.vmem [shape: c64[2,4,16,16], index: 2, kind: output, shape index: {}]
  %s3 = scalar_lea.vmem %s2, 512
  %v4 = vld [vmem:[%s0] sm:$0xff]
  %5 = vst [vmem:[%s2] sm:$0xff] %v4
  %s6 = scalar_lea.vmem %s2, 8
  %s7 = scalar_lea.vmem %s0, 8
  %v8 = vld [vmem:[%s7] sm:$0xff]
  %9 = vst [vmem:[%s6] sm:$0xff] %v8
  %s10 = scalar_lea.vmem %s2, 16
  %s11 = scalar_lea.vmem %s0, 16
  %v12 = vld [vmem:[%s11] sm:$0xff]
  %13 = vst [vmem:[%s10] sm:$0xff] %v12
  %s14 = scalar_lea.vmem %s2, 24
  %s15 = scalar_lea.vmem %s0, 24
  %v16 = vld [vmem:[%s15] sm:$0xff]
  %17 = vst [vmem:[%s14] sm:$0xff] %v16
  %s18 = scalar_lea.vmem %s2, 32
  %s19 = scalar_lea.vmem %s0, 32
  %v20 = vld [vmem:[%s19] sm:$0xff]
  %21 = vst [vmem:[%s18] sm:$0xff] %v20
  %s22 = scalar_lea.vmem %s2, 40
  %s23 = scalar_lea.vmem %s0, 40
  %v24 = vld [vmem:[%s23] sm:$0xff]
  %25 = vst [vmem:[%s22] sm:$0xff] %v24
  %s26 = scalar_lea.vmem %s2, 48
  %s27 = scalar_lea.vmem %s0, 48
  %v28 = vld [vmem:[%s27] sm:$0xff]
  %29 = vst [vmem:[%s26] sm:$0xff] %v28
  %s30 = scalar_lea.vmem %s2, 56
  %s31 = scalar_lea.vmem %s0, 56
  %v32 = vld [vmem:[%s31] sm:$0xff]
  %33 = vst [vmem:[%s30] sm:$0xff] %v32
  %s34 = scalar_lea.vmem %s2, 64
  %s35 = scalar_lea.vmem %s0, 64
  %v36 = vld [vmem:[%s35] sm:$0xff]
  %37 = vst [vmem:[%s34] sm:$0xff] %v36
  %s38 = scalar_lea.vmem %s2, 72
  %s39 = scalar_lea.vmem %s0, 72
  %v40 = vld [vmem:[%s39] sm:$0xff]
  %41 = vst [vmem:[%s38] sm:$0xff] %v40
  %s42 = scalar_lea.vmem %s2, 80
  %s43 = scalar_lea.vmem %s0, 80
  %v44 = vld [vmem:[%s43] sm:$0xff]
  %45 = vst [vmem:[%s42] sm:$0xff] %v44
  %s46 = scalar_lea.vmem %s2, 88
  %s47 = scalar_lea.vmem %s0, 88
  %v48 = vld [vmem:[%s47] sm:$0xff]
  %49 = vst [vmem:[%s46] sm:$0xff] %v48
  %s50 = scalar_lea.vmem %s2, 96
  %s51 = scalar_lea.vmem %s0, 96
  %v52 = vld [vmem:[%s51] sm:$0xff]
  %53 = vst [vmem:[%s50] sm:$0xff] %v52
  %s54 = scalar_lea.vmem %s2, 104
  %s55 = scalar_lea.vmem %s0, 104
  %v56 = vld [vmem:[%s55] sm:$0xff]
  %57 = vst [vmem:[%s54] sm:$0xff] %v56
  %s58 = scalar_lea.vmem %s2, 112
  %s59 = scalar_lea.vmem %s0, 112
  %v60 = vld [vmem:[%s59] sm:$0xff]
  %61 = vst [vmem:[%s58] sm:$0xff] %v60
  %s62 = scalar_lea.vmem %s2, 120
  %s63 = scalar_lea.vmem %s0, 120
  %v64 = vld [vmem:[%s63] sm:$0xff]
  %65 = vst [vmem:[%s62] sm:$0xff] %v64
  %s66 = scalar_lea.vmem %s2, 128
  %s67 = scalar_lea.vmem %s0, 128
  %v68 = vld [vmem:[%s67] sm:$0xff]
  %69 = vst [vmem:[%s66] sm:$0xff] %v68
  %s70 = scalar_lea.vmem %s2, 136
  %s71 = scalar_lea.vmem %s0, 136
  %v72 = vld [vmem:[%s71] sm:$0xff]
  %73 = vst [vmem:[%s70] sm:$0xff] %v72
  %s74 = scalar_lea.vmem %s2, 144
  %s75 = scalar_lea.vmem %s0, 144
  %v76 = vld [vmem:[%s75] sm:$0xff]
  %77 = vst [vmem:[%s74] sm:$0xff] %v76
  %s78 = scalar_lea.vmem %s2, 152
  %s79 = scalar_lea.vmem %s0, 152
  %v80 = vld [vmem:[%s79] sm:$0xff]
  %81 = vst [vmem:[%s78] sm:$0xff] %v80
  %s82 = scalar_lea.vmem %s2, 160
  %s83 = scalar_lea.vmem %s0, 160
  %v84 = vld [vmem:[%s83] sm:$0xff]
  %85 = vst [vmem:[%s82] sm:$0xff] %v84
  %s86 = scalar_lea.vmem %s2, 168
  %s87 = scalar_lea.vmem %s0, 168
  %v88 = vld [vmem:[%s87] sm:$0xff]
  %89 = vst [vmem:[%s86] sm:$0xff] %v88
  %s90 = scalar_lea.vmem %s2, 176
  %s91 = scalar_lea.vmem %s0, 176
  %v92 = vld [vmem:[%s91] sm:$0xff]
  %93 = vst [vmem:[%s90] sm:$0xff] %v92
  %s94 = scalar_lea.vmem %s2, 184
  %s95 = scalar_lea.vmem %s0, 184
  %v96 = vld [vmem:[%s95] sm:$0xff]
  %97 = vst [vmem:[%s94] sm:$0xff] %v96
  %s98 = scalar_lea.vmem %s2, 192
  %s99 = scalar_lea.vmem %s0, 192
  %v100 = vld [vmem:[%s99] sm:$0xff]
  %101 = vst [vmem:[%s98] sm:$0xff] %v100
  %s102 = scalar_lea.vmem %s2, 200
  %s103 = scalar_lea.vmem %s0, 200
  %v104 = vld [vmem:[%s103] sm:$0xff]
  %105 = vst [vmem:[%s102] sm:$0xff] %v104
  %s106 = scalar_lea.vmem %s2, 208
  %s107 = scalar_lea.vmem %s0, 208
  %v108 = vld [vmem:[%s107] sm:$0xff]
  %109 = vst [vmem:[%s106] sm:$0xff] %v108
  %s110 = scalar_lea.vmem %s2, 216
  %s111 = scalar_lea.vmem %s0, 216
  %v112 = vld [vmem:[%s111] sm:$0xff]
  %113 = vst [vmem:[%s110] sm:$0xff] %v112
  %s114 = scalar_lea.vmem %s2, 224
  %s115 = scalar_lea.vmem %s0, 224
  %v116 = vld [vmem:[%s115] sm:$0xff]
  %117 = vst [vmem:[%s114] sm:$0xff] %v116
  %s118 = scalar_lea.vmem %s2, 232
  %s119 = scalar_lea.vmem %s0, 232
  %v120 = vld [vmem:[%s119] sm:$0xff]
  %121 = vst [vmem:[%s118] sm:$0xff] %v120
  %s122 = scalar_lea.vmem %s2, 240
  %s123 = scalar_lea.vmem %s0, 240
  %v124 = vld [vmem:[%s123] sm:$0xff]
  %125 = vst [vmem:[%s122] sm:$0xff] %v124
  %s126 = scalar_lea.vmem %s2, 248
  %s127 = scalar_lea.vmem %s0, 248
  %v128 = vld [vmem:[%s127] sm:$0xff]
  %129 = vst [vmem:[%s126] sm:$0xff] %v128
  %s130 = scalar_lea.vmem %s2, 256
  %s131 = scalar_lea.vmem %s0, 256
  %v132 = vld [vmem:[%s131] sm:$0xff]
  %133 = vst [vmem:[%s130] sm:$0xff] %v132
  %s134 = scalar_lea.vmem %s2, 264
  %s135 = scalar_lea.vmem %s0, 264
  %v136 = vld [vmem:[%s135] sm:$0xff]
  %137 = vst [vmem:[%s134] sm:$0xff] %v136
  %s138 = scalar_lea.vmem %s2, 272
  %s139 = scalar_lea.vmem %s0, 272
  %v140 = vld [vmem:[%s139] sm:$0xff]
  %141 = vst [vmem:[%s138] sm:$0xff] %v140
  %s142 = scalar_lea.vmem %s2, 280
  %s143 = scalar_lea.vmem %s0, 280
  %v144 = vld [vmem:[%s143] sm:$0xff]
  %145 = vst [vmem:[%s142] sm:$0xff] %v144
  %s146 = scalar_lea.vmem %s2, 288
  %s147 = scalar_lea.vmem %s0, 288
  %v148 = vld [vmem:[%s147] sm:$0xff]
  %149 = vst [vmem:[%s146] sm:$0xff] %v148
  %s150 = scalar_lea.vmem %s2, 296
  %s151 = scalar_lea.vmem %s0, 296
  %v152 = vld [vmem:[%s151] sm:$0xff]
  %153 = vst [vmem:[%s150] sm:$0xff] %v152
  %s154 = scalar_lea.vmem %s2, 304
  %s155 = scalar_lea.vmem %s0, 304
  %v156 = vld [vmem:[%s155] sm:$0xff]
  %157 = vst [vmem:[%s154] sm:$0xff] %v156
  %s158 = scalar_lea.vmem %s2, 312
  %s159 = scalar_lea.vmem %s0, 312
  %v160 = vld [vmem:[%s159] sm:$0xff]
  %161 = vst [vmem:[%s158] sm:$0xff] %v160
  %s162 = scalar_lea.vmem %s2, 320
  %s163 = scalar_lea.vmem %s0, 320
  %v164 = vld [vmem:[%s163] sm:$0xff]
  %165 = vst [vmem:[%s162] sm:$0xff] %v164
  %s166 = scalar_lea.vmem %s2, 328
  %s167 = scalar_lea.vmem %s0, 328
  %v168 = vld [vmem:[%s167] sm:$0xff]
  %169 = vst [vmem:[%s166] sm:$0xff] %v168
  %s170 = scalar_lea.vmem %s2, 336
  %s171 = scalar_lea.vmem %s0, 336
  %v172 = vld [vmem:[%s171] sm:$0xff]
  %173 = vst [vmem:[%s170] sm:$0xff] %v172
  %s174 = scalar_lea.vmem %s2, 344
  %s175 = scalar_lea.vmem %s0, 344
  %v176 = vld [vmem:[%s175] sm:$0xff]
  %177 = vst [vmem:[%s174] sm:$0xff] %v176
  %s178 = scalar_lea.vmem %s2, 352
  %s179 = scalar_lea.vmem %s0, 352
  %v180 = vld [vmem:[%s179] sm:$0xff]
  %181 = vst [vmem:[%s178] sm:$0xff] %v180
  %s182 = scalar_lea.vmem %s2, 360
  %s183 = scalar_lea.vmem %s0, 360
  %v184 = vld [vmem:[%s183] sm:$0xff]
  %185 = vst [vmem:[%s182] sm:$0xff] %v184
  %s186 = scalar_lea.vmem %s2, 368
  %s187 = scalar_lea.vmem %s0, 368
  %v188 = vld [vmem:[%s187] sm:$0xff]
  %189 = vst [vmem:[%s186] sm:$0xff] %v188
  %s190 = scalar_lea.vmem %s2, 376
  %s191 = scalar_lea.vmem %s0, 376
  %v192 = vld [vmem:[%s191] sm:$0xff]
  %193 = vst [vmem:[%s190] sm:$0xff] %v192
  %s194 = scalar_lea.vmem %s2, 384
  %s195 = scalar_lea.vmem %s0, 384
  %v196 = vld [vmem:[%s195] sm:$0xff]
  %197 = vst [vmem:[%s194] sm:$0xff] %v196
  %s198 = scalar_lea.vmem %s2, 392
  %s199 = scalar_lea.vmem %s0, 392
  %v200 = vld [vmem:[%s199] sm:$0xff]
  %201 = vst [vmem:[%s198] sm:$0xff] %v200
  %s202 = scalar_lea.vmem %s2, 400
  %s203 = scalar_lea.vmem %s0, 400
  %v204 = vld [vmem:[%s203] sm:$0xff]
  %205 = vst [vmem:[%s202] sm:$0xff] %v204
  %s206 = scalar_lea.vmem %s2, 408
  %s207 = scalar_lea.vmem %s0, 408
  %v208 = vld [vmem:[%s207] sm:$0xff]
  %209 = vst [vmem:[%s206] sm:$0xff] %v208
  %s210 = scalar_lea.vmem %s2, 416
  %s211 = scalar_lea.vmem %s0, 416
  %v212 = vld [vmem:[%s211] sm:$0xff]
  %213 = vst [vmem:[%s210] sm:$0xff] %v212
  %s214 = scalar_lea.vmem %s2, 424
  %s215 = scalar_lea.vmem %s0, 424
  %v216 = vld [vmem:[%s215] sm:$0xff]
  %217 = vst [vmem:[%s214] sm:$0xff] %v216
  %s218 = scalar_lea.vmem %s2, 432
  %s219 = scalar_lea.vmem %s0, 432
  %v220 = vld [vmem:[%s219] sm:$0xff]
  %221 = vst [vmem:[%s218] sm:$0xff] %v220
  %s222 = scalar_lea.vmem %s2, 440
  %s223 = scalar_lea.vmem %s0, 440
  %v224 = vld [vmem:[%s223] sm:$0xff]
  %225 = vst [vmem:[%s222] sm:$0xff] %v224
  %s226 = scalar_lea.vmem %s2, 448
  %s227 = scalar_lea.vmem %s0, 448
  %v228 = vld [vmem:[%s227] sm:$0xff]
  %229 = vst [vmem:[%s226] sm:$0xff] %v228
  %s230 = scalar_lea.vmem %s2, 456
  %s231 = scalar_lea.vmem %s0, 456
  %v232 = vld [vmem:[%s231] sm:$0xff]
  %233 = vst [vmem:[%s230] sm:$0xff] %v232
  %s234 = scalar_lea.vmem %s2, 464
  %s235 = scalar_lea.vmem %s0, 464
  %v236 = vld [vmem:[%s235] sm:$0xff]
  %237 = vst [vmem:[%s234] sm:$0xff] %v236
  %s238 = scalar_lea.vmem %s2, 472
  %s239 = scalar_lea.vmem %s0, 472
  %v240 = vld [vmem:[%s239] sm:$0xff]
  %241 = vst [vmem:[%s238] sm:$0xff] %v240
  %s242 = scalar_lea.vmem %s2, 480
  %s243 = scalar_lea.vmem %s0, 480
  %v244 = vld [vmem:[%s243] sm:$0xff]
  %245 = vst [vmem:[%s242] sm:$0xff] %v244
  %s246 = scalar_lea.vmem %s2, 488
  %s247 = scalar_lea.vmem %s0, 488
  %v248 = vld [vmem:[%s247] sm:$0xff]
  %249 = vst [vmem:[%s246] sm:$0xff] %v248
  %s250 = scalar_lea.vmem %s2, 496
  %s251 = scalar_lea.vmem %s0, 496
  %v252 = vld [vmem:[%s251] sm:$0xff]
  %253 = vst [vmem:[%s250] sm:$0xff] %v252
  %s254 = scalar_lea.vmem %s2, 504
  %s255 = scalar_lea.vmem %s0, 504
  %v256 = vld [vmem:[%s255] sm:$0xff]
  %257 = vst [vmem:[%s254] sm:$0xff] %v256
  %v258 = vld [vmem:[%s1] sm:$0xff]
  %259 = vst [vmem:[%s3] sm:$0xff] %v258
  %s260 = scalar_lea.vmem %s3, 8
  %s261 = scalar_lea.vmem %s1, 8
  %v262 = vld [vmem:[%s261] sm:$0xff]
  %263 = vst [vmem:[%s260] sm:$0xff] %v262
  %s264 = scalar_lea.vmem %s3, 16
  %s265 = scalar_lea.vmem %s1, 16
  %v266 = vld [vmem:[%s265] sm:$0xff]
  %267 = vst [vmem:[%s264] sm:$0xff] %v266
  %s268 = scalar_lea.vmem %s3, 24
  %s269 = scalar_lea.vmem %s1, 24
  %v270 = vld [vmem:[%s269] sm:$0xff]
  %271 = vst [vmem:[%s268] sm:$0xff] %v270
  %s272 = scalar_lea.vmem %s3, 32
  %s273 = scalar_lea.vmem %s1, 32
  %v274 = vld [vmem:[%s273] sm:$0xff]
  %275 = vst [vmem:[%s272] sm:$0xff] %v274
  %s276 = scalar_lea.vmem %s3, 40
  %s277 = scalar_lea.vmem %s1, 40
  %v278 = vld [vmem:[%s277] sm:$0xff]
  %279 = vst [vmem:[%s276] sm:$0xff] %v278
  %s280 = scalar_lea.vmem %s3, 48
  %s281 = scalar_lea.vmem %s1, 48
  %v282 = vld [vmem:[%s281] sm:$0xff]
  %283 = vst [vmem:[%s280] sm:$0xff] %v282
  %s284 = scalar_lea.vmem %s3, 56
  %s285 = scalar_lea.vmem %s1, 56
  %v286 = vld [vmem:[%s285] sm:$0xff]
  %287 = vst [vmem:[%s284] sm:$0xff] %v286
  %s288 = scalar_lea.vmem %s3, 64
  %s289 = scalar_lea.vmem %s1, 64
  %v290 = vld [vmem:[%s289] sm:$0xff]
  %291 = vst [vmem:[%s288] sm:$0xff] %v290
  %s292 = scalar_lea.vmem %s3, 72
  %s293 = scalar_lea.vmem %s1, 72
  %v294 = vld [vmem:[%s293] sm:$0xff]
  %295 = vst [vmem:[%s292] sm:$0xff] %v294
  %s296 = scalar_lea.vmem %s3, 80
  %s297 = scalar_lea.vmem %s1, 80
  %v298 = vld [vmem:[%s297] sm:$0xff]
  %299 = vst [vmem:[%s296] sm:$0xff] %v298
  %s300 = scalar_lea.vmem %s3, 88
  %s301 = scalar_lea.vmem %s1, 88
  %v302 = vld [vmem:[%s301] sm:$0xff]
  %303 = vst [vmem:[%s300] sm:$0xff] %v302
  %s304 = scalar_lea.vmem %s3, 96
  %s305 = scalar_lea.vmem %s1, 96
  %v306 = vld [vmem:[%s305] sm:$0xff]
  %307 = vst [vmem:[%s304] sm:$0xff] %v306
  %s308 = scalar_lea.vmem %s3, 104
  %s309 = scalar_lea.vmem %s1, 104
  %v310 = vld [vmem:[%s309] sm:$0xff]
  %311 = vst [vmem:[%s308] sm:$0xff] %v310
  %s312 = scalar_lea.vmem %s3, 112
  %s313 = scalar_lea.vmem %s1, 112
  %v314 = vld [vmem:[%s313] sm:$0xff]
  %315 = vst [vmem:[%s312] sm:$0xff] %v314
  %s316 = scalar_lea.vmem %s3, 120
  %s317 = scalar_lea.vmem %s1, 120
  %v318 = vld [vmem:[%s317] sm:$0xff]
  %319 = vst [vmem:[%s316] sm:$0xff] %v318
  %s320 = scalar_lea.vmem %s3, 128
  %s321 = scalar_lea.vmem %s1, 128
  %v322 = vld [vmem:[%s321] sm:$0xff]
  %323 = vst [vmem:[%s320] sm:$0xff] %v322
  %s324 = scalar_lea.vmem %s3, 136
  %s325 = scalar_lea.vmem %s1, 136
  %v326 = vld [vmem:[%s325] sm:$0xff]
  %327 = vst [vmem:[%s324] sm:$0xff] %v326
  %s328 = scalar_lea.vmem %s3, 144
  %s329 = scalar_lea.vmem %s1, 144
  %v330 = vld [vmem:[%s329] sm:$0xff]
  %331 = vst [vmem:[%s328] sm:$0xff] %v330
  %s332 = scalar_lea.vmem %s3, 152
  %s333 = scalar_lea.vmem %s1, 152
  %v334 = vld [vmem:[%s333] sm:$0xff]
  %335 = vst [vmem:[%s332] sm:$0xff] %v334
  %s336 = scalar_lea.vmem %s3, 160
  %s337 = scalar_lea.vmem %s1, 160
  %v338 = vld [vmem:[%s337] sm:$0xff]
  %339 = vst [vmem:[%s336] sm:$0xff] %v338
  %s340 = scalar_lea.vmem %s3, 168
  %s341 = scalar_lea.vmem %s1, 168
  %v342 = vld [vmem:[%s341] sm:$0xff]
  %343 = vst [vmem:[%s340] sm:$0xff] %v342
  %s344 = scalar_lea.vmem %s3, 176
  %s345 = scalar_lea.vmem %s1, 176
  %v346 = vld [vmem:[%s345] sm:$0xff]
  %347 = vst [vmem:[%s344] sm:$0xff] %v346
  %s348 = scalar_lea.vmem %s3, 184
  %s349 = scalar_lea.vmem %s1, 184
  %v350 = vld [vmem:[%s349] sm:$0xff]
  %351 = vst [vmem:[%s348] sm:$0xff] %v350
  %s352 = scalar_lea.vmem %s3, 192
  %s353 = scalar_lea.vmem %s1, 192
  %v354 = vld [vmem:[%s353] sm:$0xff]
  %355 = vst [vmem:[%s352] sm:$0xff] %v354
  %s356 = scalar_lea.vmem %s3, 200
  %s357 = scalar_lea.vmem %s1, 200
  %v358 = vld [vmem:[%s357] sm:$0xff]
  %359 = vst [vmem:[%s356] sm:$0xff] %v358
  %s360 = scalar_lea.vmem %s3, 208
  %s361 = scalar_lea.vmem %s1, 208
  %v362 = vld [vmem:[%s361] sm:$0xff]
  %363 = vst [vmem:[%s360] sm:$0xff] %v362
  %s364 = scalar_lea.vmem %s3, 216
  %s365 = scalar_lea.vmem %s1, 216
  %v366 = vld [vmem:[%s365] sm:$0xff]
  %367 = vst [vmem:[%s364] sm:$0xff] %v366
  %s368 = scalar_lea.vmem %s3, 224
  %s369 = scalar_lea.vmem %s1, 224
  %v370 = vld [vmem:[%s369] sm:$0xff]
  %371 = vst [vmem:[%s368] sm:$0xff] %v370
  %s372 = scalar_lea.vmem %s3, 232
  %s373 = scalar_lea.vmem %s1, 232
  %v374 = vld [vmem:[%s373] sm:$0xff]
  %375 = vst [vmem:[%s372] sm:$0xff] %v374
  %s376 = scalar_lea.vmem %s3, 240
  %s377 = scalar_lea.vmem %s1, 240
  %v378 = vld [vmem:[%s377] sm:$0xff]
  %379 = vst [vmem:[%s376] sm:$0xff] %v378
  %s380 = scalar_lea.vmem %s3, 248
  %s381 = scalar_lea.vmem %s1, 248
  %v382 = vld [vmem:[%s381] sm:$0xff]
  %383 = vst [vmem:[%s380] sm:$0xff] %v382
  %s384 = scalar_lea.vmem %s3, 256
  %s385 = scalar_lea.vmem %s1, 256
  %v386 = vld [vmem:[%s385] sm:$0xff]
  %387 = vst [vmem:[%s384] sm:$0xff] %v386
  %s388 = scalar_lea.vmem %s3, 264
  %s389 = scalar_lea.vmem %s1, 264
  %v390 = vld [vmem:[%s389] sm:$0xff]
  %391 = vst [vmem:[%s388] sm:$0xff] %v390
  %s392 = scalar_lea.vmem %s3, 272
  %s393 = scalar_lea.vmem %s1, 272
  %v394 = vld [vmem:[%s393] sm:$0xff]
  %395 = vst [vmem:[%s392] sm:$0xff] %v394
  %s396 = scalar_lea.vmem %s3, 280
  %s397 = scalar_lea.vmem %s1, 280
  %v398 = vld [vmem:[%s397] sm:$0xff]
  %399 = vst [vmem:[%s396] sm:$0xff] %v398
  %s400 = scalar_lea.vmem %s3, 288
  %s401 = scalar_lea.vmem %s1, 288
  %v402 = vld [vmem:[%s401] sm:$0xff]
  %403 = vst [vmem:[%s400] sm:$0xff] %v402
  %s404 = scalar_lea.vmem %s3, 296
  %s405 = scalar_lea.vmem %s1, 296
  %v406 = vld [vmem:[%s405] sm:$0xff]
  %407 = vst [vmem:[%s404] sm:$0xff] %v406
  %s408 = scalar_lea.vmem %s3, 304
  %s409 = scalar_lea.vmem %s1, 304
  %v410 = vld [vmem:[%s409] sm:$0xff]
  %411 = vst [vmem:[%s408] sm:$0xff] %v410
  %s412 = scalar_lea.vmem %s3, 312
  %s413 = scalar_lea.vmem %s1, 312
  %v414 = vld [vmem:[%s413] sm:$0xff]
  %415 = vst [vmem:[%s412] sm:$0xff] %v414
  %s416 = scalar_lea.vmem %s3, 320
  %s417 = scalar_lea.vmem %s1, 320
  %v418 = vld [vmem:[%s417] sm:$0xff]
  %419 = vst [vmem:[%s416] sm:$0xff] %v418
  %s420 = scalar_lea.vmem %s3, 328
  %s421 = scalar_lea.vmem %s1, 328
  %v422 = vld [vmem:[%s421] sm:$0xff]
  %423 = vst [vmem:[%s420] sm:$0xff] %v422
  %s424 = scalar_lea.vmem %s3, 336
  %s425 = scalar_lea.vmem %s1, 336
  %v426 = vld [vmem:[%s425] sm:$0xff]
  %427 = vst [vmem:[%s424] sm:$0xff] %v426
  %s428 = scalar_lea.vmem %s3, 344
  %s429 = scalar_lea.vmem %s1, 344
  %v430 = vld [vmem:[%s429] sm:$0xff]
  %431 = vst [vmem:[%s428] sm:$0xff] %v430
  %s432 = scalar_lea.vmem %s3, 352
  %s433 = scalar_lea.vmem %s1, 352
  %v434 = vld [vmem:[%s433] sm:$0xff]
  %435 = vst [vmem:[%s432] sm:$0xff] %v434
  %s436 = scalar_lea.vmem %s3, 360
  %s437 = scalar_lea.vmem %s1, 360
  %v438 = vld [vmem:[%s437] sm:$0xff]
  %439 = vst [vmem:[%s436] sm:$0xff] %v438
  %s440 = scalar_lea.vmem %s3, 368
  %s441 = scalar_lea.vmem %s1, 368
  %v442 = vld [vmem:[%s441] sm:$0xff]
  %443 = vst [vmem:[%s440] sm:$0xff] %v442
  %s444 = scalar_lea.vmem %s3, 376
  %s445 = scalar_lea.vmem %s1, 376
  %v446 = vld [vmem:[%s445] sm:$0xff]
  %447 = vst [vmem:[%s444] sm:$0xff] %v446
  %s448 = scalar_lea.vmem %s3, 384
  %s449 = scalar_lea.vmem %s1, 384
  %v450 = vld [vmem:[%s449] sm:$0xff]
  %451 = vst [vmem:[%s448] sm:$0xff] %v450
  %s452 = scalar_lea.vmem %s3, 392
  %s453 = scalar_lea.vmem %s1, 392
  %v454 = vld [vmem:[%s453] sm:$0xff]
  %455 = vst [vmem:[%s452] sm:$0xff] %v454
  %s456 = scalar_lea.vmem %s3, 400
  %s457 = scalar_lea.vmem %s1, 400
  %v458 = vld [vmem:[%s457] sm:$0xff]
  %459 = vst [vmem:[%s456] sm:$0xff] %v458
  %s460 = scalar_lea.vmem %s3, 408
  %s461 = scalar_lea.vmem %s1, 408
  %v462 = vld [vmem:[%s461] sm:$0xff]
  %463 = vst [vmem:[%s460] sm:$0xff] %v462
  %s464 = scalar_lea.vmem %s3, 416
  %s465 = scalar_lea.vmem %s1, 416
  %v466 = vld [vmem:[%s465] sm:$0xff]
  %467 = vst [vmem:[%s464] sm:$0xff] %v466
  %s468 = scalar_lea.vmem %s3, 424
  %s469 = scalar_lea.vmem %s1, 424
  %v470 = vld [vmem:[%s469] sm:$0xff]
  %471 = vst [vmem:[%s468] sm:$0xff] %v470
  %s472 = scalar_lea.vmem %s3, 432
  %s473 = scalar_lea.vmem %s1, 432
  %v474 = vld [vmem:[%s473] sm:$0xff]
  %475 = vst [vmem:[%s472] sm:$0xff] %v474
  %s476 = scalar_lea.vmem %s3, 440
  %s477 = scalar_lea.vmem %s1, 440
  %v478 = vld [vmem:[%s477] sm:$0xff]
  %479 = vst [vmem:[%s476] sm:$0xff] %v478
  %s480 = scalar_lea.vmem %s3, 448
  %s481 = scalar_lea.vmem %s1, 448
  %v482 = vld [vmem:[%s481] sm:$0xff]
  %483 = vst [vmem:[%s480] sm:$0xff] %v482
  %s484 = scalar_lea.vmem %s3, 456
  %s485 = scalar_lea.vmem %s1, 456
  %v486 = vld [vmem:[%s485] sm:$0xff]
  %487 = vst [vmem:[%s484] sm:$0xff] %v486
  %s488 = scalar_lea.vmem %s3, 464
  %s489 = scalar_lea.vmem %s1, 464
  %v490 = vld [vmem:[%s489] sm:$0xff]
  %491 = vst [vmem:[%s488] sm:$0xff] %v490
  %s492 = scalar_lea.vmem %s3, 472
  %s493 = scalar_lea.vmem %s1, 472
  %v494 = vld [vmem:[%s493] sm:$0xff]
  %495 = vst [vmem:[%s492] sm:$0xff] %v494
  %s496 = scalar_lea.vmem %s3, 480
  %s497 = scalar_lea.vmem %s1, 480
  %v498 = vld [vmem:[%s497] sm:$0xff]
  %499 = vst [vmem:[%s496] sm:$0xff] %v498
  %s500 = scalar_lea.vmem %s3, 488
  %s501 = scalar_lea.vmem %s1, 488
  %v502 = vld [vmem:[%s501] sm:$0xff]
  %503 = vst [vmem:[%s500] sm:$0xff] %v502
  %s504 = scalar_lea.vmem %s3, 496
  %s505 = scalar_lea.vmem %s1, 496
  %v506 = vld [vmem:[%s505] sm:$0xff]
  %507 = vst [vmem:[%s504] sm:$0xff] %v506
  %s508 = scalar_lea.vmem %s3, 504
  %s509 = scalar_lea.vmem %s1, 504
  %v510 = vld [vmem:[%s509] sm:$0xff]
  %511 = vst [vmem:[%s508] sm:$0xff] %v510

// kernel: _forward.3
$region0: #{_forward.3}
  #allocation0 [shape = 'u32[]', space=smem, size = 0x4, offset = 0x4, fixed_abs, tag = 'smem constant byte address 0x4 - core index']
  #allocation1 [shape = 'u32[72,128]{1,0:T(1,128)}', space=vmem, size = 0x9000, scoped, tag = 'internal scratch']
  %s0 = inlined_call_operand.vmem [shape: f32[2,4,512], index: 0, kind: input, shape index: {}]
  %s1 = inlined_call_operand.vmem [shape: f32[4,4], index: 1, kind: input, shape index: {}]
  %s2 = inlined_call_operand.vmem [shape: f32[2,4,512], index: 2, kind: output, shape index: {}]
  %s3 = sld [smem:[#allocation0]]
  $region41: #{_forward.3} parent=0
    _
  %s5 = ssub.s32 1, %s3
  %s6 = scalar_select 0, %s5, %s3
  loop: start=0, step=1, limit=4
  $region2: #{_forward.3} parent=0 // loop_pre_header
    _
  $region3: #{_forward.3} parent=0 // loop_header
    %s8 = sphi 0, %s12
    %p9 = scmp.ge.s32.totalorder %s8, 4
    %s15 = sphi 0, %s34
    %s16 = sphi 0, %s30
    %s17 = sphi 0, %s26
    %s18 = sphi 0, %s15
    %s19 = sphi 0, %s16
    %s20 = sphi 0, %s17
    %s21 = sphi 0, %s18
    %s22 = sphi 0, %s19
    %s23 = sphi 0, %s20
    %s41 = sphi 0, %s43
    %s44 = sphi 0, %s41
    %s45 = sphi 0, %s44
    %s61 = sphi 0, %s45
    %s67 = sphi 0, %s69
    %s70 = sphi 0, %s67
    %s71 = sphi 0, %s70
    %s87 = sphi 0, %s71
    %s97 = sphi 0, %s99
    %s100 = sphi 0, %s97
    %s101 = sphi 0, %s100
    %s117 = sphi 0, %s101
  $region4: #{_forward.3} parent=0 // loop_header_branch
    %11 = sbr.rel (%p9) target = $region8
  $region5: #{_forward.3} parent=0 // loop_body
    %s13 = ssub.s32 %s8, 1
    %s14 = ssub.s32 %s8, 2
    %s24 = sadd.s32 1, %s17
    %p25 = scmp.ge.s32.totalorder %s24, 1
    %s26 = scalar_select %p25, 0, %s24
    %s27 = sadd.s32 1, %s16
    %s28 = scalar_select %p25, %s27, %s16
    %p29 = scmp.ge.s32.totalorder %s28, 2
    %s30 = scalar_select %p29, 0, %s28
    %s31 = sadd.s32 1, %s15
    %s32 = scalar_select %p29, %s31, %s15
    %p33 = scmp.ge.s32.totalorder %s32, 1
    %s34 = scalar_select %p33, 0, %s32
    %s35 = ssub.s32 %s16, %s30
    %s36 = ssub.s32 %s15, %s34
    %s37 = sor.u32 %s35, %s36
    %s38 = ssub.s32 %s17, %s26
    %s39 = sor.u32 %s37, %s38
    %p40 = scmp.eq.s32.totalorder %s39, 0
    %s42 = sadd.s32 %s41, 1
    %s43 = scalar_select %p40, %s41, %s42
    %p46 = pneg %p40
    %p47 = scmp.eq.s32.totalorder %s8, 1
    %p48 = por %p46, %p47
    %p49 = scmp.ne.s32.totalorder %s41, %s44
    %p50 = scmp.eq.s32.totalorder %s8, 0
    %p51 = por %p49, %p50
    %p52 = scmp.ne.s32.totalorder %s41, %s44
    %p53 = scmp.eq.s32.totalorder %s13, 1
    %p54 = por %p52, %p53
    %p55 = scmp.ne.s32.totalorder %s44, %s45
    %p56 = scmp.eq.s32.totalorder %s13, 0
    %p57 = por %p55, %p56
    %p58 = scmp.ne.s32.totalorder %s44, %s45
    %p59 = scmp.eq.s32.totalorder %s14, 1
    %p60 = por %p58, %p59
    %p62 = scmp.ne.s32.totalorder %s45, %s61
    %p63 = scmp.eq.s32.totalorder %s14, 0
    %p64 = por %p62, %p63
    %s65 = ssub.s32 %s15, %s34
    %p66 = scmp.eq.s32.totalorder %s65, 0
    %s68 = sadd.s32 %s67, 1
    %s69 = scalar_select %p66, %s67, %s68
    %p72 = pneg %p66
    %p73 = scmp.eq.s32.totalorder %s8, 1
    %p74 = por %p72, %p73
    %p75 = scmp.ne.s32.totalorder %s67, %s70
    %p76 = scmp.eq.s32.totalorder %s8, 0
    %p77 = por %p75, %p76
    %p78 = scmp.ne.s32.totalorder %s67, %s70
    %p79 = scmp.eq.s32.totalorder %s13, 1
    %p80 = por %p78, %p79
    %p81 = scmp.ne.s32.totalorder %s70, %s71
    %p82 = scmp.eq.s32.totalorder %s13, 0
    %p83 = por %p81, %p82
    %p84 = scmp.ne.s32.totalorder %s70, %s71
    %p85 = scmp.eq.s32.totalorder %s14, 1
    %p86 = por %p84, %p85
    %p88 = scmp.ne.s32.totalorder %s71, %s87
    %p89 = scmp.eq.s32.totalorder %s14, 0
    %p90 = por %p88, %p89
    %s91 = ssub.s32 %s16, %s30
    %s92 = ssub.s32 %s15, %s34
    %s93 = sor.u32 %s91, %s92
    %s94 = ssub.s32 %s17, %s26
    %s95 = sor.u32 %s93, %s94
    %p96 = scmp.eq.s32.totalorder %s95, 0
    %s98 = sadd.s32 %s97, 1
    %s99 = scalar_select %p96, %s97, %s98
    %p102 = pneg %p96
    %p103 = scmp.eq.s32.totalorder %s8, 1
    %p104 = por %p102, %p103
    %p105 = scmp.ne.s32.totalorder %s97, %s100
    %p106 = scmp.eq.s32.totalorder %s8, 0
    %p107 = por %p105, %p106
    %p108 = scmp.ne.s32.totalorder %s97, %s100
    %p109 = scmp.eq.s32.totalorder %s13, 1
    %p110 = por %p108, %p109
    %p111 = scmp.ne.s32.totalorder %s100, %s101
    %p112 = scmp.eq.s32.totalorder %s13, 0
    %p113 = por %p111, %p112
    %p114 = scmp.ne.s32.totalorder %s100, %s101
    %p115 = scmp.eq.s32.totalorder %s14, 1
    %p116 = por %p114, %p115
    %p118 = scmp.ne.s32.totalorder %s101, %s117
    %p119 = scmp.eq.s32.totalorder %s14, 0
    %p120 = por %p118, %p119
    %p121 = scmp.le.s32.totalorder 1, %s8
    %p122 = scmp.lt.s32.totalorder %s8, 3
    %p123 = pnand %p121, %p122
    %p124 = pneg %p123
    // Predicated region
    $region9: #{_forward.3} parent=5 // pred_check
      _
    $region10: #{_forward.3} parent=5 // pred_check_branch
      %126 = sbr.rel (%p123) target = $region12
    $region11: #{_forward.3} parent=5 // pred_region
      %s127 = ssub.s32 %s8, 1
      // Predicated region
      $region13: #{_forward.3} parent=11 // pred_check
        %p128 = pneg %p83
      $region14: #{_forward.3} parent=11 // pred_check_branch
        %130 = sbr.rel (%p128) target = $region16
      $region15: #{_forward.3} parent=11 // pred_region
        %p131 = scmp.lt.s32.totalorder %s18, 0
        %s132 = scalar_select %p131, %s18, 0
        %s133 = smul.addr %s132, 4
        %s134 = scalar_lea.vmem %s1, %s133
      $region16: #{_forward.3} parent=11 // pred_fallthru
        _
    $region12: #{_forward.3} parent=5 // pred_fallthru
      _
    %p135 = scmp.lt.s32.totalorder %s8, 2
    // Predicated region
    $region17: #{_forward.3} parent=5 // pred_check
      %p136 = pneg %p135
    $region18: #{_forward.3} parent=5 // pred_check_branch
      %138 = sbr.rel (%p136) target = $region20
    $region19: #{_forward.3} parent=5 // pred_region
      // Predicated region
      $region21: #{_forward.3} parent=19 // pred_check
        %p139 = pneg %p51
      $region22: #{_forward.3} parent=19 // pred_check_branch
        %141 = sbr.rel (%p139) target = $region24
      $region23: #{_forward.3} parent=19 // pred_region
        %s142 = smul.u32 4, %s17
        %p143 = scmp.lt.s32.totalorder %s16, 1
        %s144 = scalar_select %p143, %s16, 1
        %p145 = scmp.lt.s32.totalorder %s15, 0
        %s146 = scalar_select %p145, %s15, 0
        %p147 = scmp.lt.s32.totalorder %s142, 3
        %s148 = scalar_select %p147, %s142, 3
        %s149 = smul.addr %s146, 4
        %s150 = sadd.s32 %s148, %s149
        %s151 = smul.addr %s144, 4
        %s152 = sadd.s32 %s150, %s151
        %s153 = smul.addr %s152, 4
        %s154 = scalar_lea.vmem %s0, %s153
        %s155 = smul.u32 4, %s17
      $region24: #{_forward.3} parent=19 // pred_fallthru
        _
    $region20: #{_forward.3} parent=5 // pred_fallthru
      _
    %p156 = scmp.le.s32.totalorder 1, %s8
    %p157 = scmp.lt.s32.totalorder %s8, 3
    %p158 = pnand %p156, %p157
    %p159 = pneg %p158
    // Predicated region
    $region25: #{_forward.3} parent=5 // pred_check
      _
    $region26: #{_forward.3} parent=5 // pred_check_branch
      %161 = sbr.rel (%p158) target = $region28
    $region27: #{_forward.3} parent=5 // pred_region
      %s162 = ssub.s32 %s8, 1
      %s163 = smul.u32 4, %s20
      %p164 = scmp.lt.s32.totalorder %s19, 1
      %s165 = scalar_select %p164, %s19, 1
      %p166 = scmp.lt.s32.totalorder %s18, 0
      %s167 = scalar_select %p166, %s18, 0
      %p168 = scmp.lt.s32.totalorder %s163, 3
      %s169 = scalar_select %p168, %s163, 3
      %s170 = smul.addr %s167, 4
      %s171 = sadd.s32 %s169, %s170
      %s172 = smul.addr %s165, 4
      %s173 = sadd.s32 %s171, %s172
      %s174 = smul.addr %s173, 4
      %s175 = scalar_lea.vmem %s0, %s174
      %p176 = pneg %p57
      %p177 = pneg %p54
      %p178 = scmp.lt.s32.totalorder %s18, 0
      %s179 = scalar_select %p178, %s18, 0
      %s180 = smul.addr %s179, 4
      %s181 = scalar_lea.vmem %s1, %s180
      %p182 = pneg %p83
      %p183 = pneg %p80
      %p184 = pneg %p113
      %p185 = pneg %p110
      %s186 = smul.u32 4, %s20
      %p187 = scmp.lt.s32.totalorder %s19, 1
      %s188 = scalar_select %p187, %s19, 1
      %p189 = scmp.lt.s32.totalorder %s18, 0
      %s190 = scalar_select %p189, %s18, 0
      %p191 = scmp.lt.s32.totalorder %s186, 3
      %s192 = scalar_select %p191, %s186, 3
      %s193 = smul.addr %s190, 4
      %s194 = sadd.s32 %s192, %s193
      %s195 = smul.addr %s188, 4
      %s196 = sadd.s32 %s194, %s195
      %s197 = smul.addr %s196, 4
      %s198 = scalar_lea.vmem %s2, %s197
      %s199 = smul.u32 4, %s20
      %p200 = scmp.lt.s32.totalorder %s19, 1
      %s201 = scalar_select %p200, %s19, 1
      %p202 = scmp.lt.s32.totalorder %s18, 0
      %s203 = scalar_select %p202, %s18, 0
      %p204 = scmp.lt.s32.totalorder %s199, 3
      %s205 = scalar_select %p204, %s199, 3
      %s206 = smul.addr %s203, 4
      %s207 = sadd.s32 %s205, %s206
      %s208 = smul.addr %s201, 4
      %s209 = sadd.s32 %s207, %s208
      %s210 = smul.addr %s209, 4
      %s211 = scalar_lea.vmem %s0, %s210
      %s212 = smul.u32 4, %s20
      %p213 = scmp.lt.s32.totalorder %s18, 0
      %s214 = scalar_select %p213, %s18, 0
      %s215 = smul.addr %s214, 4
      %s216 = scalar_lea.vmem %s1, %s215
      %s217 = smul.u32 4, %s20
      %p218 = scmp.lt.s32.totalorder %s19, 1
      %s219 = scalar_select %p218, %s19, 1
      %p220 = scmp.lt.s32.totalorder %s18, 0
      %s221 = scalar_select %p220, %s18, 0
      %p222 = scmp.lt.s32.totalorder %s217, 3
      %s223 = scalar_select %p222, %s217, 3
      %s224 = smul.addr %s221, 4
      %s225 = sadd.s32 %s223, %s224
      %s226 = smul.addr %s219, 4
      %s227 = sadd.s32 %s225, %s226
      %s228 = smul.addr %s227, 4
      %s229 = scalar_lea.vmem %s2, %s228
      %s230 = smul.u32 4, %s20
      %v231 = vlaneseq
      %v232 = vand.u32 %v231, 127
      %v233 = vand.u32 %v232, 1
      %vm234 = vcmp.eq.s32.totalorder %v233, 0
      %v235 = vld [vmem:[%s216] sm:$0xf]
      %237 = vset.pattern.permute.xlu0 0
      %238 = vperm.xlu0 %237, %v235
      %v239 = vpop.permute.xlu0 %238
      %241 = vset.pattern.permute.xlu0 1
      %242 = vperm.xlu0 %241, %v235
      %v243 = vpop.permute.xlu0 %242
      %v245 = vsel %vm234, %v239, %v243
      %246 = vset.pattern.permute.xlu0 2
      %247 = vperm.xlu0 %246, %v235
      %v248 = vpop.permute.xlu0 %247
      %250 = vset.pattern.permute.xlu0 3
      %251 = vperm.xlu0 %250, %v235
      %v252 = vpop.permute.xlu0 %251
      %v254 = vsel %vm234, %v248, %v252
      %v255 = vld [vmem:[%s211] sm:$0xf]
      %v256 = vmul.f32 %v255, %v245
      %v257 = vadd.f32 %v256, %v254
      %258 = vst [vmem:[%s229] sm:$0xf] %v257
      %s259 = scalar_lea.vmem %s211, 4
      %v260 = vld [vmem:[%s259] sm:$0xf]
      %v261 = vmul.f32 %v260, %v245
      %v262 = vadd.f32 %v261, %v254
      %s263 = scalar_lea.vmem %s229, 4
      %264 = vst [vmem:[%s263] sm:$0xf] %v262
      %s265 = scalar_lea.vmem %s211, 8
      %v266 = vld [vmem:[%s265] sm:$0xf]
      %v267 = vmul.f32 %v266, %v245
      %v268 = vadd.f32 %v267, %v254
      %s269 = scalar_lea.vmem %s229, 8
      %270 = vst [vmem:[%s269] sm:$0xf] %v268
      %s271 = scalar_lea.vmem %s211, 12
      %v272 = vld [vmem:[%s271] sm:$0xf]
      %v273 = vmul.f32 %v272, %v245
      %v274 = vadd.f32 %v273, %v254
      %s275 = scalar_lea.vmem %s229, 12
      %276 = vst [vmem:[%s275] sm:$0xf] %v274
      %s277 = smul.u32 4, %s20
      %p278 = scmp.lt.s32.totalorder %s19, 1
      %s279 = scalar_select %p278, %s19, 1
      %p280 = scmp.lt.s32.totalorder %s18, 0
      %s281 = scalar_select %p280, %s18, 0
      %p282 = scmp.lt.s32.totalorder %s277, 3
      %s283 = scalar_select %p282, %s277, 3
      %s284 = smul.addr %s281, 4
      %s285 = sadd.s32 %s283, %s284
      %s286 = smul.addr %s279, 4
      %s287 = sadd.s32 %s285, %s286
      %s288 = smul.addr %s287, 4
      %s289 = scalar_lea.vmem %s2, %s288
      // Predicated region
      $region29: #{_forward.3} parent=27 // pred_check
        %p290 = pneg %p110
      $region30: #{_forward.3} parent=27 // pred_check_branch
        %292 = sbr.rel (%p290) target = $region32
      $region31: #{_forward.3} parent=27 // pred_region
        %s293 = smul.u32 4, %s20
      $region32: #{_forward.3} parent=27 // pred_fallthru
        _
    $region28: #{_forward.3} parent=5 // pred_fallthru
      _
    %p294 = scmp.le.s32.totalorder 2, %s8
    // Predicated region
    $region33: #{_forward.3} parent=5 // pred_check
      %p295 = pneg %p294
    $region34: #{_forward.3} parent=5 // pred_check_branch
      %297 = sbr.rel (%p295) target = $region36
    $region35: #{_forward.3} parent=5 // pred_region
      %s298 = ssub.s32 %s8, 2
      // Predicated region
      $region37: #{_forward.3} parent=35 // pred_check
        %p299 = pneg %p116
      $region38: #{_forward.3} parent=35 // pred_check_branch
        %301 = sbr.rel (%p299) target = $region40
      $region39: #{_forward.3} parent=35 // pred_region
        %s302 = smul.u32 4, %s23
        %p303 = scmp.lt.s32.totalorder %s22, 1
        %s304 = scalar_select %p303, %s22, 1
        %p305 = scmp.lt.s32.totalorder %s21, 0
        %s306 = scalar_select %p305, %s21, 0
        %p307 = scmp.lt.s32.totalorder %s302, 3
        %s308 = scalar_select %p307, %s302, 3
        %s309 = smul.addr %s306, 4
        %s310 = sadd.s32 %s308, %s309
        %s311 = smul.addr %s304, 4
        %s312 = sadd.s32 %s310, %s311
        %s313 = smul.addr %s312, 4
        %s314 = scalar_lea.vmem %s2, %s313
      $region40: #{_forward.3} parent=35 // pred_fallthru
        _
    $region36: #{_forward.3} parent=5 // pred_fallthru
      _
  $region6: #{_forward.3} parent=0 // loop_footer
    %s12 = sadd.s32 1, %s8
  $region7: #{_forward.3} parent=0 // loop_footer_branch
    %7 = sbr.rel target = $region3
  $region8: #{_forward.3} parent=0 // loop_exit
    _

</llo_original>
